<compile_context>
chip_gen: v5e
topology: v5e:2x2
jax: 0.10.0
libtpu: 0.0.40
codegen_flags: <defaults>
</compile_context>

<pallas_src>
import jax
import jax.numpy as jnp
from jax import lax
from jax.experimental import pallas as pl
from jax.experimental.pallas import tpu as pltpu

NEG = -1.0e30   # log(0) surrogate (finite: avoids inf-inf -> nan on the VPU)


def _ctc_loss_kernel(pred_ref, ext_ref, skip_ref, len_ref, out_ref):
    """Whole-batch CTC loss in a single kernel invocation.

    pred_ref : (T, B, C) f32   raw logits, time-major
    ext_ref  : (B, S) i32      blank-extended target labels, S = 2*L + 1
    skip_ref : (B, S) f32      1.0 where the s-2 -> s transition is legal
    len_ref  : (B, 1) i32      per-sample target lengths
    out_ref  : (1, 1) f32      scalar mean loss
    """
    T, B, C = pred_ref.shape
    S = ext_ref.shape[1]

    # ---- log_softmax over the class dim (same op order as jax.nn) ---------
    logits = pred_ref[...]
    shifted = logits - jnp.max(logits, axis=-1, keepdims=True)
    logp = shifted - jnp.log(jnp.sum(jnp.exp(shifted), axis=-1, keepdims=True))

    # ---- emissions on the blank-extended label states ----------------------
    # One-hot gather as compare + masked lane-sum on the VPU (exact f32, no
    # tiny MXU matmuls), accumulated into a register value: (T, B, S).
    class_iota = lax.broadcasted_iota(jnp.int32, (T, B, C), 2)
    cols = []
    for s in range(S):                                   # S is static
        lbl = ext_ref[:, s:s + 1]                        # (B, 1) int32
        hit = jnp.where(lbl[None, :, :] == class_iota, logp, 0.0)
        cols.append(jnp.sum(hit, axis=-1, keepdims=True))      # (T, B, 1)
    emit = jnp.concatenate(cols, axis=-1)                # (T, B, S)

    skip = skip_ref[...] > 0.5                           # (B, S) bool
    lens = len_ref[...]                                  # (B, 1) int32
    s_idx = lax.broadcasted_iota(jnp.int32, (B, S), 1)   # (B, S)

    # ---- alpha recursion (log-space CTC forward algorithm) -----------------
    # alpha carries a permanent 2-lane log(0) pad so the s-1 / s-2 reads are
    # plain static lane slices of a single register value.
    pad2 = jnp.full((B, 2), NEG, jnp.float32)
    valid0 = (s_idx < 2) & (s_idx < 2 * lens + 1)
    alpha = jnp.concatenate(
        [pad2, jnp.where(valid0, emit[0], NEG)], axis=-1)       # (B, S + 2)

    for t in range(1, T):                  # T is static -> fully unrolled
        a0 = alpha[:, 2:2 + S]             # alpha_{t-1}(s)
        a1 = alpha[:, 1:1 + S]             # alpha_{t-1}(s-1)
        a2 = jnp.where(skip, alpha[:, 0:S], NEG)                # alpha_{t-1}(s-2)
        mx = jnp.maximum(jnp.maximum(a0, a1), a2)
        lse = mx + jnp.log(jnp.exp(a0 - mx) + jnp.exp(a1 - mx)
                           + jnp.exp(a2 - mx))
        alpha = jnp.concatenate([pad2, lse + emit[t]], axis=-1)

    # ---- final log-likelihood + 'mean' reduction ----------------------------
    alpha_T = alpha[:, 2:2 + S]                           # (B, S)
    last = 2 * lens                                       # final blank state
    sel = (s_idx == last) | (s_idx == last - 1)
    vals = jnp.where(sel, alpha_T, NEG)
    mx = jnp.max(vals, axis=-1, keepdims=True)
    ll = mx + jnp.log(jnp.sum(jnp.exp(vals - mx), axis=-1, keepdims=True))
    per_sample = -ll / lens.astype(jnp.float32)           # (B, 1): loss_b/len_b

    total = per_sample[0:1, :]
    for b in range(1, B):                                 # B is static & tiny
        total = total + per_sample[b:b + 1, :]
    out_ref[...] = total * (1.0 / B)


def ctc_loss_forward(pred, target, target_length, batch_size=None, *, blank=0):
    """Matches CTCLoss.forward: pred (B,T,C) logits, target (B,L) int labels,
    target_length (B,) int. Input lengths are implicitly T for every sample
    (exactly the module's torch.full construction). Returns scalar f32."""
    del batch_size  # input lengths == T for all samples; B known from pred
    B, T, C = pred.shape
    L = target.shape[1]
    S = 2 * L + 1

    # Integer-only preprocessing (index glue), outside the kernel.
    tgt = target.astype(jnp.int32)
    ext = jnp.full((B, S), blank, jnp.int32).at[:, 1::2].set(tgt)
    ext_m2 = jnp.concatenate(
        [jnp.full((B, 2), -1, jnp.int32), ext[:, :-2]], axis=1)
    s_pos = jnp.arange(S)[None, :]
    skip = ((s_pos >= 2) & (ext != blank) & (ext != ext_m2)).astype(jnp.float32)
    lens = target_length.astype(jnp.int32).reshape(B, 1)

    # The module's own pred.permute(1, 0, 2): time-major input lets the kernel
    # keep the whole batch's CTC state in one (batch=sublane, state=lane) vreg.
    pred_tbc = jnp.transpose(pred.astype(jnp.float32), (1, 0, 2))   # (T, B, C)

    out = pl.pallas_call(
        _ctc_loss_kernel,
        out_shape=jax.ShapeDtypeStruct((1, 1), jnp.float32),
        grid=(1,),
        in_specs=[
            pl.BlockSpec((T, B, C), lambda i: (0, 0, 0)),
            pl.BlockSpec((B, S), lambda i: (0, 0)),
            pl.BlockSpec((B, S), lambda i: (0, 0)),
            pl.BlockSpec((B, 1), lambda i: (0, 0)),
        ],
        out_specs=pl.BlockSpec((1, 1), lambda i: (0, 0)),
        compiler_params=pltpu.CompilerParams(
            dimension_semantics=("arbitrary",)),
    )(pred_tbc, ext, skip, lens)
    return out[0, 0]


def ctc_loss_reference(pred, target, target_length, *, blank=0):
    """Independent pure-JAX CTC loss (blank=0, reduction='mean')."""
    B, T, C = pred.shape
    L = target.shape[1]
    S = 2 * L + 1
    logp = jax.nn.log_softmax(pred.astype(jnp.float32), axis=-1)

    tgt = target.astype(jnp.int32)
    ext = jnp.full((B, S), blank, jnp.int32).at[:, 1::2].set(tgt)
    ext_m2 = jnp.concatenate(
        [jnp.full((B, 2), -1, jnp.int32), ext[:, :-2]], axis=1)
    s_idx = jnp.arange(S)[None, :]
    skip = (s_idx >= 2) & (ext != blank) & (ext != ext_m2)
    lens = target_length.astype(jnp.int32)[:, None]

    emit = jnp.take_along_axis(logp, ext[:, None, :], axis=2)     # (B, T, S)
    alpha0 = jnp.where((s_idx < 2) & (s_idx < 2 * lens + 1), emit[:, 0, :], NEG)

    def step(alpha, emit_t):
        a1 = jnp.concatenate([jnp.full((B, 1), NEG), alpha[:, :-1]], axis=1)
        a2 = jnp.concatenate([jnp.full((B, 2), NEG), alpha[:, :-2]], axis=1)
        a2 = jnp.where(skip, a2, NEG)
        mx = jnp.maximum(jnp.maximum(alpha, a1), a2)
        new = mx + jnp.log(jnp.exp(alpha - mx) + jnp.exp(a1 - mx)
                           + jnp.exp(a2 - mx)) + emit_t
        return new, None

    alpha_T, _ = lax.scan(step, alpha0, jnp.transpose(emit, (1, 0, 2))[1:])

    last = 2 * lens
    sel = (s_idx == last) | (s_idx == last - 1)
    vals = jnp.where(sel, alpha_T, NEG)
    mx = jnp.max(vals, axis=1)
    ll = mx + jnp.log(jnp.sum(jnp.exp(vals - mx[:, None]), axis=1))
    return jnp.mean(-ll / target_length.astype(jnp.float32))


if __name__ == "__main__":
    B, T, C = 2, 8, 16          # batch, time steps, num classes (blank = 0)
    L = 3                       # padded max target length

    key = jax.random.PRNGKey(0)
    k_pred, k_tgt = jax.random.split(key)

    pred = jax.random.normal(k_pred, (B, T, C), dtype=jnp.float32)
    target = jax.random.randint(k_tgt, (B, L), 1, C, dtype=jnp.int32)
    target_length = jnp.array([3, 2], dtype=jnp.int32)

    run = jax.jit(ctc_loss_forward)
    cost = jax.block_until_ready(run(pred, target, target_length, B))

    ref = ctc_loss_reference(pred, target, target_length)
    assert cost.shape == ()
    assert bool(jnp.isfinite(cost)), "CTC loss is not finite"
    assert jnp.allclose(cost, ref, atol=1e-4, rtol=1e-4), (float(cost), float(ref))

    # TODO(synk): zero_infinity=True and reduction='sum'/'none' variants of
    # nn.CTCLoss are not implemented (module defaults are used).
    print("KERNEL_OK")
</pallas_src>

<mosaic_0001>
module attributes {stable_mosaic.version = 11 : i64} {
  func.func @_ctc_loss_kernel(%arg0: i32, %arg1: memref<8x2x16xf32, #tpu.memory_space<vmem>>, %arg2: memref<2x7xi32, #tpu.memory_space<vmem>>, %arg3: memref<2x7xf32, #tpu.memory_space<vmem>>, %arg4: memref<2x1xi32, #tpu.memory_space<vmem>>, %arg5: memref<1x1xf32, #tpu.memory_space<vmem>>) attributes {dimension_semantics = [#tpu.dimension_semantics<arbitrary>], iteration_bounds = array<i64: 1>, scalar_prefetch = 0 : i64, scratch_operands = 0 : i64, tpu.core_type = #tpu.core_type<tc>, window_params = [{pipeline_mode = #tpu.pipeline_mode<synchronous>, transform_indices = @transform_0, window_bounds = array<i64: 8, 2, 16>}, {pipeline_mode = #tpu.pipeline_mode<synchronous>, transform_indices = @transform_1, window_bounds = array<i64: 2, 7>}, {pipeline_mode = #tpu.pipeline_mode<synchronous>, transform_indices = @transform_2, window_bounds = array<i64: 2, 7>}, {pipeline_mode = #tpu.pipeline_mode<synchronous>, transform_indices = @transform_3, window_bounds = array<i64: 2, 1>}, {pipeline_mode = #tpu.pipeline_mode<synchronous>, transform_indices = @transform_4, window_bounds = array<i64: 1, 1>}]} {
    %c0 = arith.constant 0 : index
    %c0_0 = arith.constant 0 : index
    %c0_1 = arith.constant 0 : index
    %0 = vector.load %arg1[%c0, %c0_0, %c0_1] : memref<8x2x16xf32, #tpu.memory_space<vmem>>, vector<8x2x16xf32>
    %cst = arith.constant dense<0xFF800000> : vector<8x2xf32>
    %1 = vector.multi_reduction <maximumf>, %0, %cst [2] : vector<8x2x16xf32> to vector<8x2xf32>
    %2 = vector.shape_cast %1 : vector<8x2xf32> to vector<8x2x1xf32>
    %3 = vector.broadcast %2 : vector<8x2x1xf32> to vector<8x2x16xf32>
    %4 = arith.subf %0, %3 : vector<8x2x16xf32>
    %5 = math.exp %4 : vector<8x2x16xf32>
    %cst_2 = arith.constant dense<0.000000e+00> : vector<8x2xf32>
    %6 = vector.multi_reduction <add>, %5, %cst_2 [2] : vector<8x2x16xf32> to vector<8x2xf32>
    %7 = vector.shape_cast %6 : vector<8x2xf32> to vector<8x2x1xf32>
    %8 = math.log %7 : vector<8x2x1xf32>
    %9 = vector.broadcast %8 : vector<8x2x1xf32> to vector<8x2x16xf32>
    %10 = arith.subf %4, %9 : vector<8x2x16xf32>
    %11 = tpu.iota {dimensions = array<i32: 2>} : vector<8x2x16xi32>
    %c0_3 = arith.constant 0 : index
    %c0_4 = arith.constant 0 : index
    %12 = vector.load %arg2[%c0_3, %c0_4] : memref<2x7xi32, #tpu.memory_space<vmem>>, vector<2x1xi32>
    %13 = vector.shape_cast %12 : vector<2x1xi32> to vector<1x2x1xi32>
    %14 = vector.broadcast %13 : vector<1x2x1xi32> to vector<8x2x16xi32>
    %15 = arith.cmpi eq, %14, %11 : vector<8x2x16xi32>
    %cst_5 = arith.constant 0.000000e+00 : f32
    %16 = vector.broadcast %cst_5 : f32 to vector<8x2x16xf32>
    %17 = arith.select %15, %10, %16 : vector<8x2x16xi1>, vector<8x2x16xf32>
    %cst_6 = arith.constant dense<0.000000e+00> : vector<8x2xf32>
    %18 = vector.multi_reduction <add>, %17, %cst_6 [2] : vector<8x2x16xf32> to vector<8x2xf32>
    %19 = vector.shape_cast %18 : vector<8x2xf32> to vector<8x2x1xf32>
    %c0_7 = arith.constant 0 : index
    %c1 = arith.constant 1 : index
    %20 = vector.load %arg2[%c0_7, %c1] : memref<2x7xi32, #tpu.memory_space<vmem>>, vector<2x1xi32>
    %21 = vector.shape_cast %20 : vector<2x1xi32> to vector<1x2x1xi32>
    %22 = vector.broadcast %21 : vector<1x2x1xi32> to vector<8x2x16xi32>
    %23 = arith.cmpi eq, %22, %11 : vector<8x2x16xi32>
    %cst_8 = arith.constant 0.000000e+00 : f32
    %24 = vector.broadcast %cst_8 : f32 to vector<8x2x16xf32>
    %25 = arith.select %23, %10, %24 : vector<8x2x16xi1>, vector<8x2x16xf32>
    %cst_9 = arith.constant dense<0.000000e+00> : vector<8x2xf32>
    %26 = vector.multi_reduction <add>, %25, %cst_9 [2] : vector<8x2x16xf32> to vector<8x2xf32>
    %27 = vector.shape_cast %26 : vector<8x2xf32> to vector<8x2x1xf32>
    %c0_10 = arith.constant 0 : index
    %c2 = arith.constant 2 : index
    %28 = vector.load %arg2[%c0_10, %c2] : memref<2x7xi32, #tpu.memory_space<vmem>>, vector<2x1xi32>
    %29 = vector.shape_cast %28 : vector<2x1xi32> to vector<1x2x1xi32>
    %30 = vector.broadcast %29 : vector<1x2x1xi32> to vector<8x2x16xi32>
    %31 = arith.cmpi eq, %30, %11 : vector<8x2x16xi32>
    %cst_11 = arith.constant 0.000000e+00 : f32
    %32 = vector.broadcast %cst_11 : f32 to vector<8x2x16xf32>
    %33 = arith.select %31, %10, %32 : vector<8x2x16xi1>, vector<8x2x16xf32>
    %cst_12 = arith.constant dense<0.000000e+00> : vector<8x2xf32>
    %34 = vector.multi_reduction <add>, %33, %cst_12 [2] : vector<8x2x16xf32> to vector<8x2xf32>
    %35 = vector.shape_cast %34 : vector<8x2xf32> to vector<8x2x1xf32>
    %c0_13 = arith.constant 0 : index
    %c3 = arith.constant 3 : index
    %36 = vector.load %arg2[%c0_13, %c3] : memref<2x7xi32, #tpu.memory_space<vmem>>, vector<2x1xi32>
    %37 = vector.shape_cast %36 : vector<2x1xi32> to vector<1x2x1xi32>
    %38 = vector.broadcast %37 : vector<1x2x1xi32> to vector<8x2x16xi32>
    %39 = arith.cmpi eq, %38, %11 : vector<8x2x16xi32>
    %cst_14 = arith.constant 0.000000e+00 : f32
    %40 = vector.broadcast %cst_14 : f32 to vector<8x2x16xf32>
    %41 = arith.select %39, %10, %40 : vector<8x2x16xi1>, vector<8x2x16xf32>
    %cst_15 = arith.constant dense<0.000000e+00> : vector<8x2xf32>
    %42 = vector.multi_reduction <add>, %41, %cst_15 [2] : vector<8x2x16xf32> to vector<8x2xf32>
    %43 = vector.shape_cast %42 : vector<8x2xf32> to vector<8x2x1xf32>
    %c0_16 = arith.constant 0 : index
    %c4 = arith.constant 4 : index
    %44 = vector.load %arg2[%c0_16, %c4] : memref<2x7xi32, #tpu.memory_space<vmem>>, vector<2x1xi32>
    %45 = vector.shape_cast %44 : vector<2x1xi32> to vector<1x2x1xi32>
    %46 = vector.broadcast %45 : vector<1x2x1xi32> to vector<8x2x16xi32>
    %47 = arith.cmpi eq, %46, %11 : vector<8x2x16xi32>
    %cst_17 = arith.constant 0.000000e+00 : f32
    %48 = vector.broadcast %cst_17 : f32 to vector<8x2x16xf32>
    %49 = arith.select %47, %10, %48 : vector<8x2x16xi1>, vector<8x2x16xf32>
    %cst_18 = arith.constant dense<0.000000e+00> : vector<8x2xf32>
    %50 = vector.multi_reduction <add>, %49, %cst_18 [2] : vector<8x2x16xf32> to vector<8x2xf32>
    %51 = vector.shape_cast %50 : vector<8x2xf32> to vector<8x2x1xf32>
    %c0_19 = arith.constant 0 : index
    %c5 = arith.constant 5 : index
    %52 = vector.load %arg2[%c0_19, %c5] : memref<2x7xi32, #tpu.memory_space<vmem>>, vector<2x1xi32>
    %53 = vector.shape_cast %52 : vector<2x1xi32> to vector<1x2x1xi32>
    %54 = vector.broadcast %53 : vector<1x2x1xi32> to vector<8x2x16xi32>
    %55 = arith.cmpi eq, %54, %11 : vector<8x2x16xi32>
    %cst_20 = arith.constant 0.000000e+00 : f32
    %56 = vector.broadcast %cst_20 : f32 to vector<8x2x16xf32>
    %57 = arith.select %55, %10, %56 : vector<8x2x16xi1>, vector<8x2x16xf32>
    %cst_21 = arith.constant dense<0.000000e+00> : vector<8x2xf32>
    %58 = vector.multi_reduction <add>, %57, %cst_21 [2] : vector<8x2x16xf32> to vector<8x2xf32>
    %59 = vector.shape_cast %58 : vector<8x2xf32> to vector<8x2x1xf32>
    %c0_22 = arith.constant 0 : index
    %c6 = arith.constant 6 : index
    %60 = vector.load %arg2[%c0_22, %c6] : memref<2x7xi32, #tpu.memory_space<vmem>>, vector<2x1xi32>
    %61 = vector.shape_cast %60 : vector<2x1xi32> to vector<1x2x1xi32>
    %62 = vector.broadcast %61 : vector<1x2x1xi32> to vector<8x2x16xi32>
    %63 = arith.cmpi eq, %62, %11 : vector<8x2x16xi32>
    %cst_23 = arith.constant 0.000000e+00 : f32
    %64 = vector.broadcast %cst_23 : f32 to vector<8x2x16xf32>
    %65 = arith.select %63, %10, %64 : vector<8x2x16xi1>, vector<8x2x16xf32>
    %cst_24 = arith.constant dense<0.000000e+00> : vector<8x2xf32>
    %66 = vector.multi_reduction <add>, %65, %cst_24 [2] : vector<8x2x16xf32> to vector<8x2xf32>
    %67 = vector.shape_cast %66 : vector<8x2xf32> to vector<8x2x1xf32>
    %68 = tpu.concatenate %19, %27, %35, %43, %51, %59, %67 in 2 : vector<8x2x1xf32>, vector<8x2x1xf32>, vector<8x2x1xf32>, vector<8x2x1xf32>, vector<8x2x1xf32>, vector<8x2x1xf32>, vector<8x2x1xf32> -> vector<8x2x7xf32>
    %c0_25 = arith.constant 0 : index
    %c0_26 = arith.constant 0 : index
    %69 = vector.load %arg3[%c0_25, %c0_26] : memref<2x7xf32, #tpu.memory_space<vmem>>, vector<2x7xf32>
    %cst_27 = arith.constant 5.000000e-01 : f32
    %70 = vector.broadcast %cst_27 : f32 to vector<2x7xf32>
    %71 = arith.cmpf ogt, %69, %70 : vector<2x7xf32>
    %c0_28 = arith.constant 0 : index
    %c0_29 = arith.constant 0 : index
    %72 = vector.load %arg4[%c0_28, %c0_29] : memref<2x1xi32, #tpu.memory_space<vmem>>, vector<2x1xi32>
    %73 = tpu.iota {dimensions = array<i32: 1>} : vector<2x7xi32>
    %cst_30 = arith.constant -1.000000e+30 : f32
    %74 = vector.broadcast %cst_30 : f32 to vector<2x2xf32>
    %c2_i32 = arith.constant 2 : i32
    %75 = vector.broadcast %c2_i32 : i32 to vector<2x7xi32>
    %76 = arith.cmpi slt, %73, %75 : vector<2x7xi32>
    %c2_i32_31 = arith.constant 2 : i32
    %77 = vector.broadcast %c2_i32_31 : i32 to vector<2x1xi32>
    %78 = arith.muli %77, %72 : vector<2x1xi32>
    %c1_i32 = arith.constant 1 : i32
    %79 = vector.broadcast %c1_i32 : i32 to vector<2x1xi32>
    %80 = arith.addi %78, %79 : vector<2x1xi32>
    %81 = vector.broadcast %80 : vector<2x1xi32> to vector<2x7xi32>
    %82 = arith.cmpi slt, %73, %81 : vector<2x7xi32>
    %83 = arith.andi %76, %82 : vector<2x7xi1>
    %84 = vector.extract_strided_slice %68 {offsets = [0, 0, 0], sizes = [1, 2, 7], strides = [1, 1, 1]} : vector<8x2x7xf32> to vector<1x2x7xf32>
    %85 = vector.shape_cast %84 : vector<1x2x7xf32> to vector<2x7xf32>
    %cst_32 = arith.constant -1.000000e+30 : f32
    %86 = vector.broadcast %cst_32 : f32 to vector<2x7xf32>
    %87 = arith.select %83, %85, %86 : vector<2x7xi1>, vector<2x7xf32>
    %88 = tpu.concatenate %74, %87 in 1 : vector<2x2xf32>, vector<2x7xf32> -> vector<2x9xf32>
    %89 = vector.extract_strided_slice %88 {offsets = [0, 2], sizes = [2, 7], strides = [1, 1]} : vector<2x9xf32> to vector<2x7xf32>
    %90 = vector.extract_strided_slice %88 {offsets = [0, 1], sizes = [2, 7], strides = [1, 1]} : vector<2x9xf32> to vector<2x7xf32>
    %91 = vector.extract_strided_slice %88 {offsets = [0, 0], sizes = [2, 7], strides = [1, 1]} : vector<2x9xf32> to vector<2x7xf32>
    %cst_33 = arith.constant -1.000000e+30 : f32
    %92 = vector.broadcast %cst_33 : f32 to vector<2x7xf32>
    %93 = arith.select %71, %91, %92 : vector<2x7xi1>, vector<2x7xf32>
    %94 = arith.maximumf %89, %90 : vector<2x7xf32>
    %95 = arith.maximumf %94, %93 : vector<2x7xf32>
    %96 = arith.subf %89, %95 : vector<2x7xf32>
    %97 = math.exp %96 : vector<2x7xf32>
    %98 = arith.subf %90, %95 : vector<2x7xf32>
    %99 = math.exp %98 : vector<2x7xf32>
    %100 = arith.addf %97, %99 : vector<2x7xf32>
    %101 = arith.subf %93, %95 : vector<2x7xf32>
    %102 = math.exp %101 : vector<2x7xf32>
    %103 = arith.addf %100, %102 : vector<2x7xf32>
    %104 = math.log %103 : vector<2x7xf32>
    %105 = arith.addf %95, %104 : vector<2x7xf32>
    %106 = vector.extract_strided_slice %68 {offsets = [1, 0, 0], sizes = [1, 2, 7], strides = [1, 1, 1]} : vector<8x2x7xf32> to vector<1x2x7xf32>
    %107 = vector.shape_cast %106 : vector<1x2x7xf32> to vector<2x7xf32>
    %108 = arith.addf %105, %107 : vector<2x7xf32>
    %109 = tpu.concatenate %74, %108 in 1 : vector<2x2xf32>, vector<2x7xf32> -> vector<2x9xf32>
    %110 = vector.extract_strided_slice %109 {offsets = [0, 2], sizes = [2, 7], strides = [1, 1]} : vector<2x9xf32> to vector<2x7xf32>
    %111 = vector.extract_strided_slice %109 {offsets = [0, 1], sizes = [2, 7], strides = [1, 1]} : vector<2x9xf32> to vector<2x7xf32>
    %112 = vector.extract_strided_slice %109 {offsets = [0, 0], sizes = [2, 7], strides = [1, 1]} : vector<2x9xf32> to vector<2x7xf32>
    %cst_34 = arith.constant -1.000000e+30 : f32
    %113 = vector.broadcast %cst_34 : f32 to vector<2x7xf32>
    %114 = arith.select %71, %112, %113 : vector<2x7xi1>, vector<2x7xf32>
    %115 = arith.maximumf %110, %111 : vector<2x7xf32>
    %116 = arith.maximumf %115, %114 : vector<2x7xf32>
    %117 = arith.subf %110, %116 : vector<2x7xf32>
    %118 = math.exp %117 : vector<2x7xf32>
    %119 = arith.subf %111, %116 : vector<2x7xf32>
    %120 = math.exp %119 : vector<2x7xf32>
    %121 = arith.addf %118, %120 : vector<2x7xf32>
    %122 = arith.subf %114, %116 : vector<2x7xf32>
    %123 = math.exp %122 : vector<2x7xf32>
    %124 = arith.addf %121, %123 : vector<2x7xf32>
    %125 = math.log %124 : vector<2x7xf32>
    %126 = arith.addf %116, %125 : vector<2x7xf32>
    %127 = vector.extract_strided_slice %68 {offsets = [2, 0, 0], sizes = [1, 2, 7], strides = [1, 1, 1]} : vector<8x2x7xf32> to vector<1x2x7xf32>
    %128 = vector.shape_cast %127 : vector<1x2x7xf32> to vector<2x7xf32>
    %129 = arith.addf %126, %128 : vector<2x7xf32>
    %130 = tpu.concatenate %74, %129 in 1 : vector<2x2xf32>, vector<2x7xf32> -> vector<2x9xf32>
    %131 = vector.extract_strided_slice %130 {offsets = [0, 2], sizes = [2, 7], strides = [1, 1]} : vector<2x9xf32> to vector<2x7xf32>
    %132 = vector.extract_strided_slice %130 {offsets = [0, 1], sizes = [2, 7], strides = [1, 1]} : vector<2x9xf32> to vector<2x7xf32>
    %133 = vector.extract_strided_slice %130 {offsets = [0, 0], sizes = [2, 7], strides = [1, 1]} : vector<2x9xf32> to vector<2x7xf32>
    %cst_35 = arith.constant -1.000000e+30 : f32
    %134 = vector.broadcast %cst_35 : f32 to vector<2x7xf32>
    %135 = arith.select %71, %133, %134 : vector<2x7xi1>, vector<2x7xf32>
    %136 = arith.maximumf %131, %132 : vector<2x7xf32>
    %137 = arith.maximumf %136, %135 : vector<2x7xf32>
    %138 = arith.subf %131, %137 : vector<2x7xf32>
    %139 = math.exp %138 : vector<2x7xf32>
    %140 = arith.subf %132, %137 : vector<2x7xf32>
    %141 = math.exp %140 : vector<2x7xf32>
    %142 = arith.addf %139, %141 : vector<2x7xf32>
    %143 = arith.subf %135, %137 : vector<2x7xf32>
    %144 = math.exp %143 : vector<2x7xf32>
    %145 = arith.addf %142, %144 : vector<2x7xf32>
    %146 = math.log %145 : vector<2x7xf32>
    %147 = arith.addf %137, %146 : vector<2x7xf32>
    %148 = vector.extract_strided_slice %68 {offsets = [3, 0, 0], sizes = [1, 2, 7], strides = [1, 1, 1]} : vector<8x2x7xf32> to vector<1x2x7xf32>
    %149 = vector.shape_cast %148 : vector<1x2x7xf32> to vector<2x7xf32>
    %150 = arith.addf %147, %149 : vector<2x7xf32>
    %151 = tpu.concatenate %74, %150 in 1 : vector<2x2xf32>, vector<2x7xf32> -> vector<2x9xf32>
    %152 = vector.extract_strided_slice %151 {offsets = [0, 2], sizes = [2, 7], strides = [1, 1]} : vector<2x9xf32> to vector<2x7xf32>
    %153 = vector.extract_strided_slice %151 {offsets = [0, 1], sizes = [2, 7], strides = [1, 1]} : vector<2x9xf32> to vector<2x7xf32>
    %154 = vector.extract_strided_slice %151 {offsets = [0, 0], sizes = [2, 7], strides = [1, 1]} : vector<2x9xf32> to vector<2x7xf32>
    %cst_36 = arith.constant -1.000000e+30 : f32
    %155 = vector.broadcast %cst_36 : f32 to vector<2x7xf32>
    %156 = arith.select %71, %154, %155 : vector<2x7xi1>, vector<2x7xf32>
    %157 = arith.maximumf %152, %153 : vector<2x7xf32>
    %158 = arith.maximumf %157, %156 : vector<2x7xf32>
    %159 = arith.subf %152, %158 : vector<2x7xf32>
    %160 = math.exp %159 : vector<2x7xf32>
    %161 = arith.subf %153, %158 : vector<2x7xf32>
    %162 = math.exp %161 : vector<2x7xf32>
    %163 = arith.addf %160, %162 : vector<2x7xf32>
    %164 = arith.subf %156, %158 : vector<2x7xf32>
    %165 = math.exp %164 : vector<2x7xf32>
    %166 = arith.addf %163, %165 : vector<2x7xf32>
    %167 = math.log %166 : vector<2x7xf32>
    %168 = arith.addf %158, %167 : vector<2x7xf32>
    %169 = vector.extract_strided_slice %68 {offsets = [4, 0, 0], sizes = [1, 2, 7], strides = [1, 1, 1]} : vector<8x2x7xf32> to vector<1x2x7xf32>
    %170 = vector.shape_cast %169 : vector<1x2x7xf32> to vector<2x7xf32>
    %171 = arith.addf %168, %170 : vector<2x7xf32>
    %172 = tpu.concatenate %74, %171 in 1 : vector<2x2xf32>, vector<2x7xf32> -> vector<2x9xf32>
    %173 = vector.extract_strided_slice %172 {offsets = [0, 2], sizes = [2, 7], strides = [1, 1]} : vector<2x9xf32> to vector<2x7xf32>
    %174 = vector.extract_strided_slice %172 {offsets = [0, 1], sizes = [2, 7], strides = [1, 1]} : vector<2x9xf32> to vector<2x7xf32>
    %175 = vector.extract_strided_slice %172 {offsets = [0, 0], sizes = [2, 7], strides = [1, 1]} : vector<2x9xf32> to vector<2x7xf32>
    %cst_37 = arith.constant -1.000000e+30 : f32
    %176 = vector.broadcast %cst_37 : f32 to vector<2x7xf32>
    %177 = arith.select %71, %175, %176 : vector<2x7xi1>, vector<2x7xf32>
    %178 = arith.maximumf %173, %174 : vector<2x7xf32>
    %179 = arith.maximumf %178, %177 : vector<2x7xf32>
    %180 = arith.subf %173, %179 : vector<2x7xf32>
    %181 = math.exp %180 : vector<2x7xf32>
    %182 = arith.subf %174, %179 : vector<2x7xf32>
    %183 = math.exp %182 : vector<2x7xf32>
    %184 = arith.addf %181, %183 : vector<2x7xf32>
    %185 = arith.subf %177, %179 : vector<2x7xf32>
    %186 = math.exp %185 : vector<2x7xf32>
    %187 = arith.addf %184, %186 : vector<2x7xf32>
    %188 = math.log %187 : vector<2x7xf32>
    %189 = arith.addf %179, %188 : vector<2x7xf32>
    %190 = vector.extract_strided_slice %68 {offsets = [5, 0, 0], sizes = [1, 2, 7], strides = [1, 1, 1]} : vector<8x2x7xf32> to vector<1x2x7xf32>
    %191 = vector.shape_cast %190 : vector<1x2x7xf32> to vector<2x7xf32>
    %192 = arith.addf %189, %191 : vector<2x7xf32>
    %193 = tpu.concatenate %74, %192 in 1 : vector<2x2xf32>, vector<2x7xf32> -> vector<2x9xf32>
    %194 = vector.extract_strided_slice %193 {offsets = [0, 2], sizes = [2, 7], strides = [1, 1]} : vector<2x9xf32> to vector<2x7xf32>
    %195 = vector.extract_strided_slice %193 {offsets = [0, 1], sizes = [2, 7], strides = [1, 1]} : vector<2x9xf32> to vector<2x7xf32>
    %196 = vector.extract_strided_slice %193 {offsets = [0, 0], sizes = [2, 7], strides = [1, 1]} : vector<2x9xf32> to vector<2x7xf32>
    %cst_38 = arith.constant -1.000000e+30 : f32
    %197 = vector.broadcast %cst_38 : f32 to vector<2x7xf32>
    %198 = arith.select %71, %196, %197 : vector<2x7xi1>, vector<2x7xf32>
    %199 = arith.maximumf %194, %195 : vector<2x7xf32>
    %200 = arith.maximumf %199, %198 : vector<2x7xf32>
    %201 = arith.subf %194, %200 : vector<2x7xf32>
    %202 = math.exp %201 : vector<2x7xf32>
    %203 = arith.subf %195, %200 : vector<2x7xf32>
    %204 = math.exp %203 : vector<2x7xf32>
    %205 = arith.addf %202, %204 : vector<2x7xf32>
    %206 = arith.subf %198, %200 : vector<2x7xf32>
    %207 = math.exp %206 : vector<2x7xf32>
    %208 = arith.addf %205, %207 : vector<2x7xf32>
    %209 = math.log %208 : vector<2x7xf32>
    %210 = arith.addf %200, %209 : vector<2x7xf32>
    %211 = vector.extract_strided_slice %68 {offsets = [6, 0, 0], sizes = [1, 2, 7], strides = [1, 1, 1]} : vector<8x2x7xf32> to vector<1x2x7xf32>
    %212 = vector.shape_cast %211 : vector<1x2x7xf32> to vector<2x7xf32>
    %213 = arith.addf %210, %212 : vector<2x7xf32>
    %214 = tpu.concatenate %74, %213 in 1 : vector<2x2xf32>, vector<2x7xf32> -> vector<2x9xf32>
    %215 = vector.extract_strided_slice %214 {offsets = [0, 2], sizes = [2, 7], strides = [1, 1]} : vector<2x9xf32> to vector<2x7xf32>
    %216 = vector.extract_strided_slice %214 {offsets = [0, 1], sizes = [2, 7], strides = [1, 1]} : vector<2x9xf32> to vector<2x7xf32>
    %217 = vector.extract_strided_slice %214 {offsets = [0, 0], sizes = [2, 7], strides = [1, 1]} : vector<2x9xf32> to vector<2x7xf32>
    %cst_39 = arith.constant -1.000000e+30 : f32
    %218 = vector.broadcast %cst_39 : f32 to vector<2x7xf32>
    %219 = arith.select %71, %217, %218 : vector<2x7xi1>, vector<2x7xf32>
    %220 = arith.maximumf %215, %216 : vector<2x7xf32>
    %221 = arith.maximumf %220, %219 : vector<2x7xf32>
    %222 = arith.subf %215, %221 : vector<2x7xf32>
    %223 = math.exp %222 : vector<2x7xf32>
    %224 = arith.subf %216, %221 : vector<2x7xf32>
    %225 = math.exp %224 : vector<2x7xf32>
    %226 = arith.addf %223, %225 : vector<2x7xf32>
    %227 = arith.subf %219, %221 : vector<2x7xf32>
    %228 = math.exp %227 : vector<2x7xf32>
    %229 = arith.addf %226, %228 : vector<2x7xf32>
    %230 = math.log %229 : vector<2x7xf32>
    %231 = arith.addf %221, %230 : vector<2x7xf32>
    %232 = vector.extract_strided_slice %68 {offsets = [7, 0, 0], sizes = [1, 2, 7], strides = [1, 1, 1]} : vector<8x2x7xf32> to vector<1x2x7xf32>
    %233 = vector.shape_cast %232 : vector<1x2x7xf32> to vector<2x7xf32>
    %234 = arith.addf %231, %233 : vector<2x7xf32>
    %235 = tpu.concatenate %74, %234 in 1 : vector<2x2xf32>, vector<2x7xf32> -> vector<2x9xf32>
    %236 = vector.extract_strided_slice %235 {offsets = [0, 2], sizes = [2, 7], strides = [1, 1]} : vector<2x9xf32> to vector<2x7xf32>
    %c2_i32_40 = arith.constant 2 : i32
    %237 = vector.broadcast %c2_i32_40 : i32 to vector<2x1xi32>
    %238 = arith.muli %237, %72 : vector<2x1xi32>
    %239 = vector.broadcast %238 : vector<2x1xi32> to vector<2x7xi32>
    %240 = arith.cmpi eq, %73, %239 : vector<2x7xi32>
    %c1_i32_41 = arith.constant 1 : i32
    %241 = vector.broadcast %c1_i32_41 : i32 to vector<2x1xi32>
    %242 = arith.subi %238, %241 : vector<2x1xi32>
    %243 = vector.broadcast %242 : vector<2x1xi32> to vector<2x7xi32>
    %244 = arith.cmpi eq, %73, %243 : vector<2x7xi32>
    %245 = arith.ori %240, %244 : vector<2x7xi1>
    %cst_42 = arith.constant -1.000000e+30 : f32
    %246 = vector.broadcast %cst_42 : f32 to vector<2x7xf32>
    %247 = arith.select %245, %236, %246 : vector<2x7xi1>, vector<2x7xf32>
    %cst_43 = arith.constant dense<0xFF800000> : vector<2xf32>
    %248 = vector.multi_reduction <maximumf>, %247, %cst_43 [1] : vector<2x7xf32> to vector<2xf32>
    %249 = vector.shape_cast %248 : vector<2xf32> to vector<2x1xf32>
    %250 = vector.broadcast %249 : vector<2x1xf32> to vector<2x7xf32>
    %251 = arith.subf %247, %250 : vector<2x7xf32>
    %252 = math.exp %251 : vector<2x7xf32>
    %cst_44 = arith.constant dense<0.000000e+00> : vector<2xf32>
    %253 = vector.multi_reduction <add>, %252, %cst_44 [1] : vector<2x7xf32> to vector<2xf32>
    %254 = vector.shape_cast %253 : vector<2xf32> to vector<2x1xf32>
    %255 = math.log %254 : vector<2x1xf32>
    %256 = arith.addf %249, %255 : vector<2x1xf32>
    %cst_45 = arith.constant 0.000000e+00 : f32
    %257 = vector.broadcast %cst_45 : f32 to vector<2x1xf32>
    %258 = arith.subf %257, %256 : vector<2x1xf32>
    %259 = arith.sitofp %72 : vector<2x1xi32> to vector<2x1xf32>
    %260 = arith.divf %258, %259 : vector<2x1xf32>
    %261 = vector.extract_strided_slice %260 {offsets = [0, 0], sizes = [1, 1], strides = [1, 1]} : vector<2x1xf32> to vector<1x1xf32>
    %262 = vector.extract_strided_slice %260 {offsets = [1, 0], sizes = [1, 1], strides = [1, 1]} : vector<2x1xf32> to vector<1x1xf32>
    %263 = arith.addf %261, %262 : vector<1x1xf32>
    %cst_46 = arith.constant 5.000000e-01 : f32
    %264 = vector.broadcast %cst_46 : f32 to vector<1x1xf32>
    %265 = arith.mulf %263, %264 : vector<1x1xf32>
    %c0_47 = arith.constant 0 : index
    %c0_48 = arith.constant 0 : index
    %266 = vector.load %arg5[%c0_47, %c0_48] : memref<1x1xf32, #tpu.memory_space<vmem>>, vector<1x1xf32>
    tpu.vector_store %arg5[%c0_47, %c0_48], %265 {strides = array<i32>} : memref<1x1xf32, #tpu.memory_space<vmem>>, vector<1x1xf32>,
    return
  }
  func.func @transform_0(%arg0: i32) -> (i32, i32, i32) {
    %c0_i32 = arith.constant 0 : i32
    %c0_i32_0 = arith.constant 0 : i32
    %c0_i32_1 = arith.constant 0 : i32
    %c0_i32_2 = arith.constant 0 : i32
    return %c0_i32, %c0_i32_0, %c0_i32_1 : i32, i32, i32
  }
  func.func @transform_1(%arg0: i32) -> (i32, i32) {
    %c0_i32 = arith.constant 0 : i32
    %c0_i32_0 = arith.constant 0 : i32
    %c0_i32_1 = arith.constant 0 : i32
    return %c0_i32, %c0_i32_0 : i32, i32
  }
  func.func @transform_2(%arg0: i32) -> (i32, i32) {
    %c0_i32 = arith.constant 0 : i32
    %c0_i32_0 = arith.constant 0 : i32
    %c0_i32_1 = arith.constant 0 : i32
    return %c0_i32, %c0_i32_0 : i32, i32
  }
  func.func @transform_3(%arg0: i32) -> (i32, i32) {
    %c0_i32 = arith.constant 0 : i32
    %c0_i32_0 = arith.constant 0 : i32
    %c0_i32_1 = arith.constant 0 : i32
    return %c0_i32, %c0_i32_0 : i32, i32
  }
  func.func @transform_4(%arg0: i32) -> (i32, i32) {
    %c0_i32 = arith.constant 0 : i32
    %c0_i32_0 = arith.constant 0 : i32
    %c0_i32_1 = arith.constant 0 : i32
    return %c0_i32, %c0_i32_0 : i32, i32
  }
}

</mosaic_0001>

<llo_original>
// kernel: ctc_loss_forward.1
$region0: #{ctc_loss_forward.1}
  #allocation0 [shape = 'u32[]', space=smem, size = 0x4, offset = 0x4, fixed_abs, tag = 'smem constant byte address 0x4 - core index']
  #allocation1 [shape = 'u32[72,128]{1,0:T(1,128)}', space=vmem, size = 0x9000, scoped, tag = 'internal scratch']
  %s0 = inlined_call_operand.vmem [shape: f32[8,2,16], index: 0, kind: input, shape index: {}]
  %s1 = inlined_call_operand.vmem [shape: s32[2,7], index: 1, kind: input, shape index: {}]
  %s2 = inlined_call_operand.vmem [shape: f32[2,7], index: 2, kind: input, shape index: {}]
  %s3 = inlined_call_operand.vmem [shape: s32[2,1], index: 3, kind: input, shape index: {}]
  %s4 = inlined_call_operand.hbm [shape: f32[1,1], index: 4, kind: output, shape index: {}]
  %s5 = sld [smem:[#allocation0]]
  $region26: #{ctc_loss_forward.1} parent=0
    _
  %s7 = ssub.s32 1, %s5
  %s8 = scalar_select 0, %s7, %s5
  $region1: #{ctc_loss_forward.1} parent=0
    #allocation2 [shape = 'u8[512]{0}', space=vmem, size = 0x400, scoped, tag = 'output window, operand 0, single buffered']
    #allocation3 [shape = 's32[1]{0}', space=sflag, size = 0x4, scoped, tag = 'scoped memory for ctc_loss_forward.1']
    %9 = vsyncpa [#allocation3], 0
    // Predicated region
    $region2: #{ctc_loss_forward.1} parent=1 // pred_check
      _
    $region3: #{ctc_loss_forward.1} parent=1 // pred_check_branch
      %11 = sbr.rel (0) target = $region5
    $region4: #{ctc_loss_forward.1} parent=1 // pred_region
      _
    $region5: #{ctc_loss_forward.1} parent=1 // pred_fallthru
      _
    // Predicated region
    $region6: #{ctc_loss_forward.1} parent=1 // pred_check
      _
    $region7: #{ctc_loss_forward.1} parent=1 // pred_check_branch
      %13 = sbr.rel (0) target = $region9
    $region8: #{ctc_loss_forward.1} parent=1 // pred_region
      _
    $region9: #{ctc_loss_forward.1} parent=1 // pred_fallthru
      _
    // Predicated region
    $region10: #{ctc_loss_forward.1} parent=1 // pred_check
      _
    $region11: #{ctc_loss_forward.1} parent=1 // pred_check_branch
      %15 = sbr.rel (0) target = $region13
    $region12: #{ctc_loss_forward.1} parent=1 // pred_region
      _
    $region13: #{ctc_loss_forward.1} parent=1 // pred_fallthru
      _
    // Predicated region
    $region14: #{ctc_loss_forward.1} parent=1 // pred_check
      _
    $region15: #{ctc_loss_forward.1} parent=1 // pred_check_branch
      %17 = sbr.rel (0) target = $region17
    $region16: #{ctc_loss_forward.1} parent=1 // pred_region
      _
    $region17: #{ctc_loss_forward.1} parent=1 // pred_fallthru
      _
    %v18 = vld [vmem:[%s0] sm:$0x3]
    %v19 = vld [vmem:[%s0 + $0x2] sm:$0x3]
    %v20 = vld [vmem:[%s0 + $0x4] sm:$0x3]
    %v21 = vld [vmem:[%s0 + $0x6] sm:$0x3]
    %v22 = vld [vmem:[%s0 + $0x8] sm:$0x3]
    %v23 = vld [vmem:[%s0 + $0xa] sm:$0x3]
    %v24 = vld [vmem:[%s0 + $0xc] sm:$0x3]
    %v25 = vld [vmem:[%s0 + $0xe] sm:$0x3]
    %vm26 = vcmask 123904
    %v27 = vsel %vm26, %v18, -inf
    %28 = vmax.xlane.f32.xlu0 %v27
    %v29 = vpop.xlane.xlu0 %28
    %v30 = vsel %vm26, %v19, -inf
    %31 = vmax.xlane.f32.xlu0 %v30
    %v32 = vpop.xlane.xlu0 %31
    %v33 = vsel %vm26, %v20, -inf
    %34 = vmax.xlane.f32.xlu0 %v33
    %v35 = vpop.xlane.xlu0 %34
    %v36 = vsel %vm26, %v21, -inf
    %37 = vmax.xlane.f32.xlu0 %v36
    %v38 = vpop.xlane.xlu0 %37
    %v39 = vsel %vm26, %v22, -inf
    %40 = vmax.xlane.f32.xlu0 %v39
    %v41 = vpop.xlane.xlu0 %40
    %v42 = vsel %vm26, %v23, -inf
    %43 = vmax.xlane.f32.xlu0 %v42
    %v44 = vpop.xlane.xlu0 %43
    %v45 = vsel %vm26, %v24, -inf
    %46 = vmax.xlane.f32.xlu0 %v45
    %v47 = vpop.xlane.xlu0 %46
    %v48 = vsel %vm26, %v25, -inf
    %49 = vmax.xlane.f32.xlu0 %v48
    %v50 = vpop.xlane.xlu0 %49
    %v51 = vsub.f32 %v18, %v29
    %v52 = vsub.f32 %v19, %v32
    %v53 = vsub.f32 %v20, %v35
    %v54 = vsub.f32 %v21, %v38
    %v55 = vsub.f32 %v22, %v41
    %v56 = vsub.f32 %v23, %v44
    %v57 = vsub.f32 %v24, %v47
    %v58 = vsub.f32 %v25, %v50
    %v59 = vmul.f32 %v51, 1.442695
    %v60 = vpow.pop %v59
    %v61 = vmul.f32 %v52, 1.442695
    %v62 = vpow.pop %v61
    %v63 = vmul.f32 %v53, 1.442695
    %v64 = vpow.pop %v63
    %v65 = vmul.f32 %v54, 1.442695
    %v66 = vpow.pop %v65
    %v67 = vmul.f32 %v55, 1.442695
    %v68 = vpow.pop %v67
    %v69 = vmul.f32 %v56, 1.442695
    %v70 = vpow.pop %v69
    %v71 = vmul.f32 %v57, 1.442695
    %v72 = vpow.pop %v71
    %v73 = vmul.f32 %v58, 1.442695
    %v74 = vpow.pop %v73
    %v75 = vsel %vm26, %v60, 0.0
    %76 = vadd.xlane.f32.xlu0 %v75
    %v77 = vpop.xlane.xlu0 %76
    %v78 = vsel %vm26, %v62, 0.0
    %79 = vadd.xlane.f32.xlu0 %v78
    %v80 = vpop.xlane.xlu0 %79
    %v81 = vsel %vm26, %v64, 0.0
    %82 = vadd.xlane.f32.xlu0 %v81
    %v83 = vpop.xlane.xlu0 %82
    %v84 = vsel %vm26, %v66, 0.0
    %85 = vadd.xlane.f32.xlu0 %v84
    %v86 = vpop.xlane.xlu0 %85
    %v87 = vsel %vm26, %v68, 0.0
    %88 = vadd.xlane.f32.xlu0 %v87
    %v89 = vpop.xlane.xlu0 %88
    %v90 = vsel %vm26, %v70, 0.0
    %91 = vadd.xlane.f32.xlu0 %v90
    %v92 = vpop.xlane.xlu0 %91
    %v93 = vsel %vm26, %v72, 0.0
    %94 = vadd.xlane.f32.xlu0 %v93
    %v95 = vpop.xlane.xlu0 %94
    %v96 = vsel %vm26, %v74, 0.0
    %97 = vadd.xlane.f32.xlu0 %v96
    %v98 = vpop.xlane.xlu0 %97
    %v99 = vlog2.pop %v77
    %v100 = vmul.f32 %v99, 0.6931472
    %v101 = vlog2.pop %v80
    %v102 = vmul.f32 %v101, 0.6931472
    %v103 = vlog2.pop %v83
    %v104 = vmul.f32 %v103, 0.6931472
    %v105 = vlog2.pop %v86
    %v106 = vmul.f32 %v105, 0.6931472
    %v107 = vlog2.pop %v89
    %v108 = vmul.f32 %v107, 0.6931472
    %v109 = vlog2.pop %v92
    %v110 = vmul.f32 %v109, 0.6931472
    %v111 = vlog2.pop %v95
    %v112 = vmul.f32 %v111, 0.6931472
    %v113 = vlog2.pop %v98
    %v114 = vmul.f32 %v113, 0.6931472
    %v115 = vsub.f32 %v51, %v100
    %v116 = vsub.f32 %v52, %v102
    %v117 = vsub.f32 %v53, %v104
    %v118 = vsub.f32 %v54, %v106
    %v119 = vsub.f32 %v55, %v108
    %v120 = vsub.f32 %v56, %v110
    %v121 = vsub.f32 %v57, %v112
    %v122 = vsub.f32 %v58, %v114
    %v123 = vlaneseq
    %v124 = vand.u32 %v123, 127
    %v125 = vld [vmem:[%s1] sm:$0x3]
    %126 = vset.pattern.permute.xlu0 0
    %127 = vperm.xlu0 %126, %v125
    %v128 = vpop.permute.xlu0 %127
    %vm129 = vcmp.eq.s32.totalorder %v128, %v124
    %v130 = vsel %vm129, %v115, 0.0
    %v131 = vsel %vm129, %v116, 0.0
    %v132 = vsel %vm129, %v117, 0.0
    %v133 = vsel %vm129, %v118, 0.0
    %v134 = vsel %vm129, %v119, 0.0
    %v135 = vsel %vm129, %v120, 0.0
    %v136 = vsel %vm129, %v121, 0.0
    %v137 = vsel %vm129, %v122, 0.0
    %v138 = vsel %vm26, %v130, 0.0
    %139 = vadd.xlane.f32.xlu0 %v138
    %v140 = vpop.xlane.xlu0 %139
    %v141 = vsel %vm26, %v131, 0.0
    %142 = vadd.xlane.f32.xlu0 %v141
    %v143 = vpop.xlane.xlu0 %142
    %v144 = vsel %vm26, %v132, 0.0
    %145 = vadd.xlane.f32.xlu0 %v144
    %v146 = vpop.xlane.xlu0 %145
    %v147 = vsel %vm26, %v133, 0.0
    %148 = vadd.xlane.f32.xlu0 %v147
    %v149 = vpop.xlane.xlu0 %148
    %v150 = vsel %vm26, %v134, 0.0
    %151 = vadd.xlane.f32.xlu0 %v150
    %v152 = vpop.xlane.xlu0 %151
    %v153 = vsel %vm26, %v135, 0.0
    %154 = vadd.xlane.f32.xlu0 %v153
    %v155 = vpop.xlane.xlu0 %154
    %v156 = vsel %vm26, %v136, 0.0
    %157 = vadd.xlane.f32.xlu0 %v156
    %v158 = vpop.xlane.xlu0 %157
    %v159 = vsel %vm26, %v137, 0.0
    %160 = vadd.xlane.f32.xlu0 %v159
    %v161 = vpop.xlane.xlu0 %160
    %162 = vset.pattern.permute.xlu0 1
    %163 = vperm.xlu0 %162, %v125
    %v164 = vpop.permute.xlu0 %163
    %vm165 = vcmp.eq.s32.totalorder %v164, %v124
    %v166 = vsel %vm165, %v115, 0.0
    %v167 = vsel %vm165, %v116, 0.0
    %v168 = vsel %vm165, %v117, 0.0
    %v169 = vsel %vm165, %v118, 0.0
    %v170 = vsel %vm165, %v119, 0.0
    %v171 = vsel %vm165, %v120, 0.0
    %v172 = vsel %vm165, %v121, 0.0
    %v173 = vsel %vm165, %v122, 0.0
    %v174 = vsel %vm26, %v166, 0.0
    %175 = vadd.xlane.f32.xlu0 %v174
    %v176 = vpop.xlane.xlu0 %175
    %v177 = vsel %vm26, %v167, 0.0
    %178 = vadd.xlane.f32.xlu0 %v177
    %v179 = vpop.xlane.xlu0 %178
    %v180 = vsel %vm26, %v168, 0.0
    %181 = vadd.xlane.f32.xlu0 %v180
    %v182 = vpop.xlane.xlu0 %181
    %v183 = vsel %vm26, %v169, 0.0
    %184 = vadd.xlane.f32.xlu0 %v183
    %v185 = vpop.xlane.xlu0 %184
    %v186 = vsel %vm26, %v170, 0.0
    %187 = vadd.xlane.f32.xlu0 %v186
    %v188 = vpop.xlane.xlu0 %187
    %v189 = vsel %vm26, %v171, 0.0
    %190 = vadd.xlane.f32.xlu0 %v189
    %v191 = vpop.xlane.xlu0 %190
    %v192 = vsel %vm26, %v172, 0.0
    %193 = vadd.xlane.f32.xlu0 %v192
    %v194 = vpop.xlane.xlu0 %193
    %v195 = vsel %vm26, %v173, 0.0
    %196 = vadd.xlane.f32.xlu0 %v195
    %v197 = vpop.xlane.xlu0 %196
    %198 = vset.pattern.permute.xlu0 2
    %199 = vperm.xlu0 %198, %v125
    %v200 = vpop.permute.xlu0 %199
    %vm201 = vcmp.eq.s32.totalorder %v200, %v124
    %v202 = vsel %vm201, %v115, 0.0
    %v203 = vsel %vm201, %v116, 0.0
    %v204 = vsel %vm201, %v117, 0.0
    %v205 = vsel %vm201, %v118, 0.0
    %v206 = vsel %vm201, %v119, 0.0
    %v207 = vsel %vm201, %v120, 0.0
    %v208 = vsel %vm201, %v121, 0.0
    %v209 = vsel %vm201, %v122, 0.0
    %v210 = vsel %vm26, %v202, 0.0
    %211 = vadd.xlane.f32.xlu0 %v210
    %v212 = vpop.xlane.xlu0 %211
    %v213 = vsel %vm26, %v203, 0.0
    %214 = vadd.xlane.f32.xlu0 %v213
    %v215 = vpop.xlane.xlu0 %214
    %v216 = vsel %vm26, %v204, 0.0
    %217 = vadd.xlane.f32.xlu0 %v216
    %v218 = vpop.xlane.xlu0 %217
    %v219 = vsel %vm26, %v205, 0.0
    %220 = vadd.xlane.f32.xlu0 %v219
    %v221 = vpop.xlane.xlu0 %220
    %v222 = vsel %vm26, %v206, 0.0
    %223 = vadd.xlane.f32.xlu0 %v222
    %v224 = vpop.xlane.xlu0 %223
    %v225 = vsel %vm26, %v207, 0.0
    %226 = vadd.xlane.f32.xlu0 %v225
    %v227 = vpop.xlane.xlu0 %226
    %v228 = vsel %vm26, %v208, 0.0
    %229 = vadd.xlane.f32.xlu0 %v228
    %v230 = vpop.xlane.xlu0 %229
    %v231 = vsel %vm26, %v209, 0.0
    %232 = vadd.xlane.f32.xlu0 %v231
    %v233 = vpop.xlane.xlu0 %232
    %234 = vset.pattern.permute.xlu0 3
    %235 = vperm.xlu0 %234, %v125
    %v236 = vpop.permute.xlu0 %235
    %vm237 = vcmp.eq.s32.totalorder %v236, %v124
    %v238 = vsel %vm237, %v115, 0.0
    %v239 = vsel %vm237, %v116, 0.0
    %v240 = vsel %vm237, %v117, 0.0
    %v241 = vsel %vm237, %v118, 0.0
    %v242 = vsel %vm237, %v119, 0.0
    %v243 = vsel %vm237, %v120, 0.0
    %v244 = vsel %vm237, %v121, 0.0
    %v245 = vsel %vm237, %v122, 0.0
    %v246 = vsel %vm26, %v238, 0.0
    %247 = vadd.xlane.f32.xlu0 %v246
    %v248 = vpop.xlane.xlu0 %247
    %v249 = vsel %vm26, %v239, 0.0
    %250 = vadd.xlane.f32.xlu0 %v249
    %v251 = vpop.xlane.xlu0 %250
    %v252 = vsel %vm26, %v240, 0.0
    %253 = vadd.xlane.f32.xlu0 %v252
    %v254 = vpop.xlane.xlu0 %253
    %v255 = vsel %vm26, %v241, 0.0
    %256 = vadd.xlane.f32.xlu0 %v255
    %v257 = vpop.xlane.xlu0 %256
    %v258 = vsel %vm26, %v242, 0.0
    %259 = vadd.xlane.f32.xlu0 %v258
    %v260 = vpop.xlane.xlu0 %259
    %v261 = vsel %vm26, %v243, 0.0
    %262 = vadd.xlane.f32.xlu0 %v261
    %v263 = vpop.xlane.xlu0 %262
    %v264 = vsel %vm26, %v244, 0.0
    %265 = vadd.xlane.f32.xlu0 %v264
    %v266 = vpop.xlane.xlu0 %265
    %v267 = vsel %vm26, %v245, 0.0
    %268 = vadd.xlane.f32.xlu0 %v267
    %v269 = vpop.xlane.xlu0 %268
    %270 = vset.pattern.permute.xlu0 4
    %271 = vperm.xlu0 %270, %v125
    %v272 = vpop.permute.xlu0 %271
    %vm273 = vcmp.eq.s32.totalorder %v272, %v124
    %v274 = vsel %vm273, %v115, 0.0
    %v275 = vsel %vm273, %v116, 0.0
    %v276 = vsel %vm273, %v117, 0.0
    %v277 = vsel %vm273, %v118, 0.0
    %v278 = vsel %vm273, %v119, 0.0
    %v279 = vsel %vm273, %v120, 0.0
    %v280 = vsel %vm273, %v121, 0.0
    %v281 = vsel %vm273, %v122, 0.0
    %v282 = vsel %vm26, %v274, 0.0
    %283 = vadd.xlane.f32.xlu0 %v282
    %v284 = vpop.xlane.xlu0 %283
    %v285 = vsel %vm26, %v275, 0.0
    %286 = vadd.xlane.f32.xlu0 %v285
    %v287 = vpop.xlane.xlu0 %286
    %v288 = vsel %vm26, %v276, 0.0
    %289 = vadd.xlane.f32.xlu0 %v288
    %v290 = vpop.xlane.xlu0 %289
    %v291 = vsel %vm26, %v277, 0.0
    %292 = vadd.xlane.f32.xlu0 %v291
    %v293 = vpop.xlane.xlu0 %292
    %v294 = vsel %vm26, %v278, 0.0
    %295 = vadd.xlane.f32.xlu0 %v294
    %v296 = vpop.xlane.xlu0 %295
    %v297 = vsel %vm26, %v279, 0.0
    %298 = vadd.xlane.f32.xlu0 %v297
    %v299 = vpop.xlane.xlu0 %298
    %v300 = vsel %vm26, %v280, 0.0
    %301 = vadd.xlane.f32.xlu0 %v300
    %v302 = vpop.xlane.xlu0 %301
    %v303 = vsel %vm26, %v281, 0.0
    %304 = vadd.xlane.f32.xlu0 %v303
    %v305 = vpop.xlane.xlu0 %304
    %306 = vset.pattern.permute.xlu0 5
    %307 = vperm.xlu0 %306, %v125
    %v308 = vpop.permute.xlu0 %307
    %vm309 = vcmp.eq.s32.totalorder %v308, %v124
    %v310 = vsel %vm309, %v115, 0.0
    %v311 = vsel %vm309, %v116, 0.0
    %v312 = vsel %vm309, %v117, 0.0
    %v313 = vsel %vm309, %v118, 0.0
    %v314 = vsel %vm309, %v119, 0.0
    %v315 = vsel %vm309, %v120, 0.0
    %v316 = vsel %vm309, %v121, 0.0
    %v317 = vsel %vm309, %v122, 0.0
    %v318 = vsel %vm26, %v310, 0.0
    %319 = vadd.xlane.f32.xlu0 %v318
    %v320 = vpop.xlane.xlu0 %319
    %v321 = vsel %vm26, %v311, 0.0
    %322 = vadd.xlane.f32.xlu0 %v321
    %v323 = vpop.xlane.xlu0 %322
    %v324 = vsel %vm26, %v312, 0.0
    %325 = vadd.xlane.f32.xlu0 %v324
    %v326 = vpop.xlane.xlu0 %325
    %v327 = vsel %vm26, %v313, 0.0
    %328 = vadd.xlane.f32.xlu0 %v327
    %v329 = vpop.xlane.xlu0 %328
    %v330 = vsel %vm26, %v314, 0.0
    %331 = vadd.xlane.f32.xlu0 %v330
    %v332 = vpop.xlane.xlu0 %331
    %v333 = vsel %vm26, %v315, 0.0
    %334 = vadd.xlane.f32.xlu0 %v333
    %v335 = vpop.xlane.xlu0 %334
    %v336 = vsel %vm26, %v316, 0.0
    %337 = vadd.xlane.f32.xlu0 %v336
    %v338 = vpop.xlane.xlu0 %337
    %v339 = vsel %vm26, %v317, 0.0
    %340 = vadd.xlane.f32.xlu0 %v339
    %v341 = vpop.xlane.xlu0 %340
    %342 = vset.pattern.permute.xlu0 6
    %343 = vperm.xlu0 %342, %v125
    %v344 = vpop.permute.xlu0 %343
    %vm345 = vcmp.eq.s32.totalorder %v344, %v124
    %v346 = vsel %vm345, %v115, 0.0
    %v347 = vsel %vm345, %v116, 0.0
    %v348 = vsel %vm345, %v117, 0.0
    %v349 = vsel %vm345, %v118, 0.0
    %v350 = vsel %vm345, %v119, 0.0
    %v351 = vsel %vm345, %v120, 0.0
    %v352 = vsel %vm345, %v121, 0.0
    %v353 = vsel %vm345, %v122, 0.0
    %v354 = vsel %vm26, %v346, 0.0
    %355 = vadd.xlane.f32.xlu0 %v354
    %v356 = vpop.xlane.xlu0 %355
    %v357 = vsel %vm26, %v347, 0.0
    %358 = vadd.xlane.f32.xlu0 %v357
    %v359 = vpop.xlane.xlu0 %358
    %v360 = vsel %vm26, %v348, 0.0
    %361 = vadd.xlane.f32.xlu0 %v360
    %v362 = vpop.xlane.xlu0 %361
    %v363 = vsel %vm26, %v349, 0.0
    %364 = vadd.xlane.f32.xlu0 %v363
    %v365 = vpop.xlane.xlu0 %364
    %v366 = vsel %vm26, %v350, 0.0
    %367 = vadd.xlane.f32.xlu0 %v366
    %v368 = vpop.xlane.xlu0 %367
    %v369 = vsel %vm26, %v351, 0.0
    %370 = vadd.xlane.f32.xlu0 %v369
    %v371 = vpop.xlane.xlu0 %370
    %v372 = vsel %vm26, %v352, 0.0
    %373 = vadd.xlane.f32.xlu0 %v372
    %v374 = vpop.xlane.xlu0 %373
    %v375 = vsel %vm26, %v353, 0.0
    %376 = vadd.xlane.f32.xlu0 %v375
    %v377 = vpop.xlane.xlu0 %376
    %vm378 = vcmask 7168
    %v379 = vsel %vm378, %v140, %v176
    %v380 = vsel %vm378, %v143, %v179
    %v381 = vsel %vm378, %v146, %v182
    %v382 = vsel %vm378, %v149, %v185
    %v383 = vsel %vm378, %v152, %v188
    %v384 = vsel %vm378, %v155, %v191
    %v385 = vsel %vm378, %v158, %v194
    %v386 = vsel %vm378, %v161, %v197
    %vm387 = vcmask 15360
    %v388 = vsel %vm387, %v379, %v212
    %v389 = vsel %vm387, %v380, %v215
    %v390 = vsel %vm387, %v381, %v218
    %v391 = vsel %vm387, %v382, %v221
    %v392 = vsel %vm387, %v383, %v224
    %v393 = vsel %vm387, %v384, %v227
    %v394 = vsel %vm387, %v385, %v230
    %v395 = vsel %vm387, %v386, %v233
    %vm396 = vcmask 23552
    %v397 = vsel %vm396, %v388, %v248
    %v398 = vsel %vm396, %v389, %v251
    %v399 = vsel %vm396, %v390, %v254
    %v400 = vsel %vm396, %v391, %v257
    %v401 = vsel %vm396, %v392, %v260
    %v402 = vsel %vm396, %v393, %v263
    %v403 = vsel %vm396, %v394, %v266
    %v404 = vsel %vm396, %v395, %v269
    %vm405 = vcmask 31744
    %v406 = vsel %vm405, %v397, %v284
    %v407 = vsel %vm405, %v398, %v287
    %v408 = vsel %vm405, %v399, %v290
    %v409 = vsel %vm405, %v400, %v293
    %v410 = vsel %vm405, %v401, %v296
    %v411 = vsel %vm405, %v402, %v299
    %v412 = vsel %vm405, %v403, %v302
    %v413 = vsel %vm405, %v404, %v305
    %vm414 = vcmask 39936
    %v415 = vsel %vm414, %v406, %v320
    %v416 = vsel %vm414, %v407, %v323
    %v417 = vsel %vm414, %v408, %v326
    %v418 = vsel %vm414, %v409, %v329
    %v419 = vsel %vm414, %v410, %v332
    %v420 = vsel %vm414, %v411, %v335
    %v421 = vsel %vm414, %v412, %v338
    %v422 = vsel %vm414, %v413, %v341
    %vm423 = vcmask 48128
    %v424 = vsel %vm423, %v415, %v356
    %v425 = vsel %vm423, %v416, %v359
    %v426 = vsel %vm423, %v417, %v362
    %v427 = vsel %vm423, %v418, %v365
    %v428 = vsel %vm423, %v419, %v368
    %v429 = vsel %vm423, %v420, %v371
    %v430 = vsel %vm423, %v421, %v374
    %v431 = vsel %vm423, %v422, %v377
    %v432 = vld [vmem:[%s2] sm:$0x3]
    %vm433 = vcmp.gt.f32.partialorder %v432, 0.5
    %v434 = vld [vmem:[%s3] sm:$0x3]
    %vm435 = vcmp.lt.s32.totalorder %v124, 2
    %v436 = vmul.u32 %v434, 2
    %v437 = vadd.s32 %v436, 1
    %438 = vset.pattern.permute.xlu0 0
    %439 = vperm.xlu0 %438, %v437
    %v440 = vpop.permute.xlu0 %439
    %vm441 = vcmp.lt.s32.totalorder %v124, %v440
    %vm442 = vmand %vm435, %vm441
    %v443 = vsel %vm442, %v424, -1e+30
    %445 = vrot.lane.b32.xlu0 %v443, 2
    %v446 = vpop.permute.xlu0 %445
    %v448 = vsel %vm387, -1e+30, %v446
    %v449 = vsel %vm433, %v448, -1e+30
    %451 = vrot.lane.b32.xlu0 %v448, 1
    %v452 = vpop.permute.xlu0 %451
    %v454 = vmax.f32 %v448, %v452
    %456 = vrot.lane.b32.xlu0 %v449, 2
    %v457 = vpop.permute.xlu0 %456
    %v459 = vmax.f32 %v454, %v457
    %v460 = vsub.f32 %v448, %v459
    %v461 = vmul.f32 %v460, 1.442695
    %v462 = vpow.pop %v461
    %464 = vrot.lane.b32.xlu0 %v459, 127
    %v465 = vpop.permute.xlu0 %464
    %v467 = vsub.f32 %v448, %v465
    %v468 = vmul.f32 %v467, 1.442695
    %v469 = vpow.pop %v468
    %471 = vrot.lane.b32.xlu0 %v469, 1
    %v472 = vpop.permute.xlu0 %471
    %v474 = vadd.f32 %v462, %v472
    %475 = vrot.lane.b32.xlu0 %v459, 126
    %v476 = vpop.permute.xlu0 %475
    %v478 = vsub.f32 %v449, %v476
    %v479 = vmul.f32 %v478, 1.442695
    %v480 = vpow.pop %v479
    %482 = vrot.lane.b32.xlu0 %v480, 2
    %v483 = vpop.permute.xlu0 %482
    %v485 = vadd.f32 %v474, %v483
    %v486 = vlog2.pop %v485
    %v487 = vmul.f32 %v486, 0.6931472
    %v488 = vadd.f32 %v459, %v487
    %490 = vrot.lane.b32.xlu0 %v425, 2
    %v491 = vpop.permute.xlu0 %490
    %v493 = vadd.f32 %v488, %v491
    %v494 = vsel %vm387, -1e+30, %v493
    %v495 = vsel %vm433, %v494, -1e+30
    %497 = vrot.lane.b32.xlu0 %v494, 1
    %v498 = vpop.permute.xlu0 %497
    %v500 = vmax.f32 %v494, %v498
    %502 = vrot.lane.b32.xlu0 %v495, 2
    %v503 = vpop.permute.xlu0 %502
    %v505 = vmax.f32 %v500, %v503
    %v506 = vsub.f32 %v494, %v505
    %v507 = vmul.f32 %v506, 1.442695
    %v508 = vpow.pop %v507
    %510 = vrot.lane.b32.xlu0 %v505, 127
    %v511 = vpop.permute.xlu0 %510
    %v513 = vsub.f32 %v494, %v511
    %v514 = vmul.f32 %v513, 1.442695
    %v515 = vpow.pop %v514
    %517 = vrot.lane.b32.xlu0 %v515, 1
    %v518 = vpop.permute.xlu0 %517
    %v520 = vadd.f32 %v508, %v518
    %521 = vrot.lane.b32.xlu0 %v505, 126
    %v522 = vpop.permute.xlu0 %521
    %v524 = vsub.f32 %v495, %v522
    %v525 = vmul.f32 %v524, 1.442695
    %v526 = vpow.pop %v525
    %528 = vrot.lane.b32.xlu0 %v526, 2
    %v529 = vpop.permute.xlu0 %528
    %v531 = vadd.f32 %v520, %v529
    %v532 = vlog2.pop %v531
    %v533 = vmul.f32 %v532, 0.6931472
    %v534 = vadd.f32 %v505, %v533
    %536 = vrot.lane.b32.xlu0 %v426, 2
    %v537 = vpop.permute.xlu0 %536
    %v539 = vadd.f32 %v534, %v537
    %v540 = vsel %vm387, -1e+30, %v539
    %v541 = vsel %vm433, %v540, -1e+30
    %543 = vrot.lane.b32.xlu0 %v540, 1
    %v544 = vpop.permute.xlu0 %543
    %v546 = vmax.f32 %v540, %v544
    %548 = vrot.lane.b32.xlu0 %v541, 2
    %v549 = vpop.permute.xlu0 %548
    %v551 = vmax.f32 %v546, %v549
    %v552 = vsub.f32 %v540, %v551
    %v553 = vmul.f32 %v552, 1.442695
    %v554 = vpow.pop %v553
    %556 = vrot.lane.b32.xlu0 %v551, 127
    %v557 = vpop.permute.xlu0 %556
    %v559 = vsub.f32 %v540, %v557
    %v560 = vmul.f32 %v559, 1.442695
    %v561 = vpow.pop %v560
    %563 = vrot.lane.b32.xlu0 %v561, 1
    %v564 = vpop.permute.xlu0 %563
    %v566 = vadd.f32 %v554, %v564
    %567 = vrot.lane.b32.xlu0 %v551, 126
    %v568 = vpop.permute.xlu0 %567
    %v570 = vsub.f32 %v541, %v568
    %v571 = vmul.f32 %v570, 1.442695
    %v572 = vpow.pop %v571
    %574 = vrot.lane.b32.xlu0 %v572, 2
    %v575 = vpop.permute.xlu0 %574
    %v577 = vadd.f32 %v566, %v575
    %v578 = vlog2.pop %v577
    %v579 = vmul.f32 %v578, 0.6931472
    %v580 = vadd.f32 %v551, %v579
    %582 = vrot.lane.b32.xlu0 %v427, 2
    %v583 = vpop.permute.xlu0 %582
    %v585 = vadd.f32 %v580, %v583
    %v586 = vsel %vm387, -1e+30, %v585
    %v587 = vsel %vm433, %v586, -1e+30
    %589 = vrot.lane.b32.xlu0 %v586, 1
    %v590 = vpop.permute.xlu0 %589
    %v592 = vmax.f32 %v586, %v590
    %594 = vrot.lane.b32.xlu0 %v587, 2
    %v595 = vpop.permute.xlu0 %594
    %v597 = vmax.f32 %v592, %v595
    %v598 = vsub.f32 %v586, %v597
    %v599 = vmul.f32 %v598, 1.442695
    %v600 = vpow.pop %v599
    %602 = vrot.lane.b32.xlu0 %v597, 127
    %v603 = vpop.permute.xlu0 %602
    %v605 = vsub.f32 %v586, %v603
    %v606 = vmul.f32 %v605, 1.442695
    %v607 = vpow.pop %v606
    %609 = vrot.lane.b32.xlu0 %v607, 1
    %v610 = vpop.permute.xlu0 %609
    %v612 = vadd.f32 %v600, %v610
    %613 = vrot.lane.b32.xlu0 %v597, 126
    %v614 = vpop.permute.xlu0 %613
    %v616 = vsub.f32 %v587, %v614
    %v617 = vmul.f32 %v616, 1.442695
    %v618 = vpow.pop %v617
    %620 = vrot.lane.b32.xlu0 %v618, 2
    %v621 = vpop.permute.xlu0 %620
    %v623 = vadd.f32 %v612, %v621
    %v624 = vlog2.pop %v623
    %v625 = vmul.f32 %v624, 0.6931472
    %v626 = vadd.f32 %v597, %v625
    %628 = vrot.lane.b32.xlu0 %v428, 2
    %v629 = vpop.permute.xlu0 %628
    %v631 = vadd.f32 %v626, %v629
    %v632 = vsel %vm387, -1e+30, %v631
    %v633 = vsel %vm433, %v632, -1e+30
    %635 = vrot.lane.b32.xlu0 %v632, 1
    %v636 = vpop.permute.xlu0 %635
    %v638 = vmax.f32 %v632, %v636
    %640 = vrot.lane.b32.xlu0 %v633, 2
    %v641 = vpop.permute.xlu0 %640
    %v643 = vmax.f32 %v638, %v641
    %v644 = vsub.f32 %v632, %v643
    %v645 = vmul.f32 %v644, 1.442695
    %v646 = vpow.pop %v645
    %648 = vrot.lane.b32.xlu0 %v643, 127
    %v649 = vpop.permute.xlu0 %648
    %v651 = vsub.f32 %v632, %v649
    %v652 = vmul.f32 %v651, 1.442695
    %v653 = vpow.pop %v652
    %655 = vrot.lane.b32.xlu0 %v653, 1
    %v656 = vpop.permute.xlu0 %655
    %v658 = vadd.f32 %v646, %v656
    %659 = vrot.lane.b32.xlu0 %v643, 126
    %v660 = vpop.permute.xlu0 %659
    %v662 = vsub.f32 %v633, %v660
    %v663 = vmul.f32 %v662, 1.442695
    %v664 = vpow.pop %v663
    %666 = vrot.lane.b32.xlu0 %v664, 2
    %v667 = vpop.permute.xlu0 %666
    %v669 = vadd.f32 %v658, %v667
    %v670 = vlog2.pop %v669
    %v671 = vmul.f32 %v670, 0.6931472
    %v672 = vadd.f32 %v643, %v671
    %674 = vrot.lane.b32.xlu0 %v429, 2
    %v675 = vpop.permute.xlu0 %674
    %v677 = vadd.f32 %v672, %v675
    %v678 = vsel %vm387, -1e+30, %v677
    %v679 = vsel %vm433, %v678, -1e+30
    %681 = vrot.lane.b32.xlu0 %v678, 1
    %v682 = vpop.permute.xlu0 %681
    %v684 = vmax.f32 %v678, %v682
    %686 = vrot.lane.b32.xlu0 %v679, 2
    %v687 = vpop.permute.xlu0 %686
    %v689 = vmax.f32 %v684, %v687
    %v690 = vsub.f32 %v678, %v689
    %v691 = vmul.f32 %v690, 1.442695
    %v692 = vpow.pop %v691
    %694 = vrot.lane.b32.xlu0 %v689, 127
    %v695 = vpop.permute.xlu0 %694
    %v697 = vsub.f32 %v678, %v695
    %v698 = vmul.f32 %v697, 1.442695
    %v699 = vpow.pop %v698
    %701 = vrot.lane.b32.xlu0 %v699, 1
    %v702 = vpop.permute.xlu0 %701
    %v704 = vadd.f32 %v692, %v702
    %705 = vrot.lane.b32.xlu0 %v689, 126
    %v706 = vpop.permute.xlu0 %705
    %v708 = vsub.f32 %v679, %v706
    %v709 = vmul.f32 %v708, 1.442695
    %v710 = vpow.pop %v709
    %712 = vrot.lane.b32.xlu0 %v710, 2
    %v713 = vpop.permute.xlu0 %712
    %v715 = vadd.f32 %v704, %v713
    %v716 = vlog2.pop %v715
    %v717 = vmul.f32 %v716, 0.6931472
    %v718 = vadd.f32 %v689, %v717
    %720 = vrot.lane.b32.xlu0 %v430, 2
    %v721 = vpop.permute.xlu0 %720
    %v723 = vadd.f32 %v718, %v721
    %v724 = vsel %vm387, -1e+30, %v723
    %v725 = vsel %vm433, %v724, -1e+30
    %727 = vrot.lane.b32.xlu0 %v724, 1
    %v728 = vpop.permute.xlu0 %727
    %v730 = vmax.f32 %v724, %v728
    %732 = vrot.lane.b32.xlu0 %v725, 2
    %v733 = vpop.permute.xlu0 %732
    %v735 = vmax.f32 %v730, %v733
    %v736 = vsub.f32 %v724, %v735
    %v737 = vmul.f32 %v736, 1.442695
    %v738 = vpow.pop %v737
    %740 = vrot.lane.b32.xlu0 %v735, 127
    %v741 = vpop.permute.xlu0 %740
    %v743 = vsub.f32 %v724, %v741
    %v744 = vmul.f32 %v743, 1.442695
    %v745 = vpow.pop %v744
    %747 = vrot.lane.b32.xlu0 %v745, 1
    %v748 = vpop.permute.xlu0 %747
    %v750 = vadd.f32 %v738, %v748
    %751 = vrot.lane.b32.xlu0 %v735, 126
    %v752 = vpop.permute.xlu0 %751
    %v754 = vsub.f32 %v725, %v752
    %v755 = vmul.f32 %v754, 1.442695
    %v756 = vpow.pop %v755
    %758 = vrot.lane.b32.xlu0 %v756, 2
    %v759 = vpop.permute.xlu0 %758
    %v761 = vadd.f32 %v750, %v759
    %v762 = vlog2.pop %v761
    %v763 = vmul.f32 %v762, 0.6931472
    %v764 = vadd.f32 %v735, %v763
    %766 = vrot.lane.b32.xlu0 %v431, 2
    %v767 = vpop.permute.xlu0 %766
    %v769 = vadd.f32 %v764, %v767
    %v770 = vsel %vm387, -1e+30, %v769
    %771 = vset.pattern.permute.xlu0 0
    %772 = vperm.xlu0 %771, %v436
    %v773 = vpop.permute.xlu0 %772
    %vm774 = vcmp.eq.s32.totalorder %v124, %v773
    %v775 = vsub.s32 %v436, 1
    %776 = vset.pattern.permute.xlu0 0
    %777 = vperm.xlu0 %776, %v775
    %v778 = vpop.permute.xlu0 %777
    %vm779 = vcmp.eq.s32.totalorder %v124, %v778
    %vm780 = vmor %vm774, %vm779
    %782 = vrot.lane.b32.xlu0 %v770, 126
    %v783 = vpop.permute.xlu0 %782
    %v785 = vsel %vm780, %v783, -1e+30
    %vm786 = vcmask 50176
    %v787 = vsel %vm786, %v785, -inf
    %788 = vmax.xlane.f32.xlu0 %v787
    %v789 = vpop.xlane.xlu0 %788
    %v790 = vsub.f32 %v785, %v789
    %v791 = vmul.f32 %v790, 1.442695
    %v792 = vpow.pop %v791
    %v793 = vsel %vm786, %v792, 0.0
    %794 = vadd.xlane.f32.xlu0 %v793
    %v795 = vpop.xlane.xlu0 %794
    %v796 = vlog2.pop %v795
    %v797 = vmul.f32 %v796, 0.6931472
    %v798 = vadd.f32 %v789, %v797
    %v799 = vsub.f32 0.0, %v798
    %v800 = vcvt.s32.f32 %v434
    %v801 = vrcp.pop %v800
    %v802 = vmul.f32 %v800, %v801
    %v803 = vsub.f32 1.0, %v802
    %v804 = vmul.f32 %v801, %v803
    %v805 = vadd.f32 %v801, %v804
    %vm806 = vweird.f32 %v800
    %vm807 = vweird.f32 %v801
    %vm808 = vmor %vm806, %vm807
    %v809 = vsel %vm808, %v801, %v805
    %v810 = vand.u32 2147483647, %v800
    %vm811 = vcmp.eq.f32.partialorder %v810, 8.507059e+37
    %v812 = vand.u32 %v800, 2147483648
    %v813 = vor.u32 1.1754944e-38, %v812
    %v814 = vsel %vm811, %v813, %v809
    %v815 = vmul.f32 %v799, %v814
    %v817 = vrot.slane %v815, 1
    %v819 = vadd.f32 %v815, %v817
    %v820 = vmul.f32 %v819, 0.5
    %vm821 = vcmask 0
    %822 = vst.msk [vmem:[#allocation2] sm:$0x1] %vm821, %v820
    // Predicated region
    $region18: #{ctc_loss_forward.1} parent=1 // pred_check
      _
    $region19: #{ctc_loss_forward.1} parent=1 // pred_check_branch
      %824 = sbr.rel (0) target = $region21
    $region20: #{ctc_loss_forward.1} parent=1 // pred_region
      %826 = vsyncadd [#allocation3], 0
      %s828 = sshll.u32 [#allocation2], 4
      %s829 = int_to_ptr.vmem [resolvable:$true] %s828
      %s830 = sshll.u32 %s4, 4
      %s831 = int_to_ptr.hbm [resolvable:$true] %s830
      %833 = dma.vmem_to_hbm [thread:$0]  %s829, 16, %s831, [#allocation3]
    $region21: #{ctc_loss_forward.1} parent=1 // pred_fallthru
      _
    // Predicated region
    $region22: #{ctc_loss_forward.1} parent=1 // pred_check
      _
    $region23: #{ctc_loss_forward.1} parent=1 // pred_check_branch
      %835 = sbr.rel (0) target = $region25
    $region24: #{ctc_loss_forward.1} parent=1 // pred_region
      %837 = dma.done [#allocation3], 16
    $region25: #{ctc_loss_forward.1} parent=1 // pred_fallthru
      _
    %838 = vsyncpa [#allocation3], 1

</llo_original>
